<compile_context>
chip_gen: v7x
topology: tpu7x:2x2x1
jax: 0.10.0
libtpu: 0.0.40
codegen_flags: <defaults>
</compile_context>

<pallas_src>
import jax
import jax.numpy as jnp
from jax import lax
from jax.experimental import pallas as pl
from jax.experimental.pallas import tpu as pltpu


# ---------------------------------------------------------------------------
# Hardware queries (best-effort; all failures fall back to safe defaults).
# ---------------------------------------------------------------------------
def _device_kind() -> str:
    try:
        return jax.devices()[0].device_kind.lower()
    except Exception:
        return ""


def _vmem_capacity_bytes() -> int:
    try:
        return int(pltpu.get_tpu_info().vmem_capacity_bytes)
    except Exception:
        # v5e / v6e: 128 MiB per TensorCore; v7x: 64 MiB.
        return (64 << 20) if "v7" in _device_kind() else (128 << 20)


def _num_tensorcores() -> int:
    # Only v7x exposes 2 TensorCores per chip to `parallel` grid sharding.
    return 2 if "v7" in _device_kind() else 1


def _is_v5e() -> bool:
    kind = _device_kind()
    return ("v5e" in kind) or ("v5 lite" in kind) or ("v5lite" in kind)


def _sublane(itemsize: int) -> int:
    # f32 -> 8 rows, bf16 -> 16, int8/fp8 -> 32.
    return max(8, 32 // max(1, itemsize))


# ---------------------------------------------------------------------------
# Kernels
# ---------------------------------------------------------------------------
def _make_mlp_kernel(apply_tanh: bool, normalize: bool, block_n: int,
                     t_pad: int, t_valid: int, compute_dtype):
    """out_mlp=True path. Blocks: x (bN, Tp, D), w (D, tH), b (1, tH),
    o (bN, Tp, tH)."""

    def kernel(x_ref, w_ref, b_ref, o_ref):
        d = x_ref.shape[-1]
        h = w_ref.shape[-1]
        # Fuse the stack axis into M: (bN, Tp, D) -> (bN*Tp, D). Tp is
        # sublane-aligned (wrapper pads), so this reshape is layout-free.
        x2d = x_ref[...].reshape(block_n * t_pad, d)
        y = jnp.dot(x2d, w_ref[...], preferred_element_type=jnp.float32)
        y = y + b_ref[...].astype(jnp.float32)
        y = y.astype(compute_dtype)
        if apply_tanh:
            y = jnp.tanh(y)                                    # EUP slot
        y = y.reshape(block_n, t_pad, h)
        if normalize:
            # F.normalize(p=2, dim=1): per-(n, feature) L2 over the T axis.
            if t_valid < t_pad:
                t_idx = lax.broadcasted_iota(jnp.int32, (block_n, t_pad, h), 1)
                yv = jnp.where(t_idx < t_valid, y, jnp.zeros_like(y))
            else:
                yv = y
            sq = jnp.sum((yv * yv).astype(jnp.float32), axis=1, keepdims=True)
            # rsqrt(max(sq, 1e-24)) == 1 / max(sqrt(sq), 1e-12) (torch clamp),
            # but runs on the EUP instead of a VALU divide.
            inv = lax.rsqrt(jnp.maximum(sq, 1e-24))
            y = y * inv.astype(compute_dtype)
        o_ref[...] = y.astype(o_ref.dtype)

    return kernel


def _make_plain_kernel(apply_tanh: bool, normalize: bool, compute_dtype):
    """out_mlp=False path. x_ref / o_ref: (bN, T, D). No reshapes needed."""

    def kernel(x_ref, o_ref):
        y = x_ref[...].astype(compute_dtype)
        if apply_tanh:
            y = jnp.tanh(y)
        if normalize:
            sq = jnp.sum((y * y).astype(jnp.float32), axis=1, keepdims=True)
            y = y * lax.rsqrt(jnp.maximum(sq, 1e-24)).astype(compute_dtype)
        o_ref[...] = y.astype(o_ref.dtype)

    return kernel


# ---------------------------------------------------------------------------
# Block sizing: byte-targeted (HBM-bound), VMEM-budgeted, generation-aware.
# ---------------------------------------------------------------------------
def _pick_block_n(N: int, t_pad: int, D: int, tH: int, in_item: int,
                  out_item: int, w_item: int, work_budget: int,
                  num_cores: int) -> int:
    per_n_bytes = t_pad * (D * in_item + tH * out_item)
    target_bytes = 4 << 20                      # ~4 MiB of x+out per step
    bn = max(1, int(target_bytes // max(1, per_n_bytes)))
    bn = min(bn, N)

    resident = (D * tH + tH) * w_item           # single-buffered weight+bias

    def footprint(b):
        return 2 * b * t_pad * (D * in_item + tH * out_item) + resident

    while bn > 1 and footprint(bn) > work_budget:
        bn = max(1, bn // 2)

    # v7x only: keep >= 2 (ideally an even number of) grid steps so both
    # TensorCores get work. On v5e/v6e the grid is a serial loop, so a single
    # full-size block is preferred.
    if num_cores >= 2 and N >= 2:
        steps = -(-N // bn)
        if steps < 2:
            bn = -(-N // 2)
        elif steps % 2:
            bn = max(1, -(-N // (steps + 1)))
    return int(max(1, bn))


# ---------------------------------------------------------------------------
# Public API
# ---------------------------------------------------------------------------
def slowfast_pooling(x, w=None, b=None, *, out_mlp: bool = True,
                     out_tanh: bool = True, out_dtype=None):
    """JAX/Pallas equivalent of SlowFastPooling.forward (eval mode).

    x: pre-stacked (N, T, D) array.
    w: (D, H) linear weight (NOTE: transposed w.r.t. torch nn.Linear's (H, D));
       required when out_mlp is truthy.
    b: (H,) linear bias (zeros if None).
    out_dtype: optional output dtype (e.g. bf16) to halve output HBM traffic.
    Returns (out, None, att_mask) with out (N, T, H) and att_mask (N, T).
    """
    N, T, D = x.shape
    apply_mlp = bool(out_mlp)
    if apply_mlp:
        if w is None:
            raise ValueError("out_mlp is truthy but no weight `w` was given; "
                             "pass w of shape (D, H) (transposed vs torch).")
        if w.ndim != 2 or w.shape[0] != D:
            raise ValueError(f"weight must be (D={D}, H); got {w.shape} "
                             "(remember: transposed vs torch nn.Linear).")
        H = int(w.shape[1])
        if b is None:
            b = jnp.zeros((H,), dtype=w.dtype)
    else:
        H = D
    normalize = T > 1
    out_dtype = jnp.dtype(x.dtype) if out_dtype is None else jnp.dtype(out_dtype)

    in_item = jnp.dtype(x.dtype).itemsize
    out_item = out_dtype.itemsize
    w_item = jnp.dtype(w.dtype).itemsize if apply_mlp else in_item

    # Epilogue dtype: stay in the input precision on chips with bf16 VPU/EUP
    # (v6e/v7x); upcast to f32 on v5e (no bf16 VPU/EUP) or for f32 inputs.
    if x.dtype == jnp.float32 or _is_v5e():
        compute_dtype = jnp.float32
    else:
        compute_dtype = x.dtype

    # T alignment: only the MLP path reshapes (bN,T,D)->(bN*T,D), so only it
    # needs T padded to the sublane tile for dense retile-free layout.
    if apply_mlp:
        sub = max(_sublane(in_item), _sublane(out_item))
        t_pad = T if T % sub == 0 else (-(-T // sub)) * sub
    else:
        t_pad = T

    # H tiling for very wide outputs (bounds VMEM; lane-dense tiles of >=128).
    tH = H
    if apply_mlp and H > 512:
        for cand in (512, 384, 256, 128):
            if H % cand == 0:
                tH = cand
                break
    h_blocks = H // tH if apply_mlp else 1

    # Generation-aware VMEM budget.
    vmem_cap = _vmem_capacity_bytes()
    work_budget = max(8 << 20, vmem_cap // 2 - (4 << 20))
    bn = _pick_block_n(N, t_pad, D, tH, in_item, out_item, w_item,
                       work_budget, _num_tensorcores())
    n_pad = (-(-N // bn)) * bn
    n_blocks = n_pad // bn

    # Pad the stacked input so every block is full-size and sublane-dense.
    xp = x
    if n_pad != N or t_pad != T:
        xp = jnp.pad(x, ((0, n_pad - N), (0, t_pad - T), (0, 0)))

    footprint = (2 * bn * t_pad * (D * in_item + tH * out_item)
                 + (D * tH + tH) * w_item)
    vmem_limit = int(max(32 << 20,
                         min(vmem_cap * 3 // 4, footprint + (16 << 20))))

    compiler_params = pltpu.CompilerParams(
        dimension_semantics=("parallel",) * (2 if h_blocks > 1 else 1),
        vmem_limit_bytes=vmem_limit)

    def _resident_spec(shape, index_map, single_buffer):
        if single_buffer:
            # Constant-index blocks still get 2 buffers by default; keep the
            # resident weight/bias single-buffered to free VMEM for x/out.
            return pl.BlockSpec(shape, index_map, pipeline_mode=pl.Buffered(1))
        return pl.BlockSpec(shape, index_map)

    if apply_mlp:
        kernel = _make_mlp_kernel(bool(out_tanh), normalize, bn, t_pad, T,
                                  compute_dtype)
        args = (xp, w, b.reshape(1, H))

        if h_blocks > 1:
            # Grid (h, n): n innermost, so the (D, tH) weight slab stays
            # resident across the whole N sweep for each h.
            grid = (h_blocks, n_blocks)
            x_map = lambda h, n: (n, 0, 0)
            o_spec = pl.BlockSpec((bn, t_pad, tH), lambda h, n: (n, 0, h))

            def build_in_specs(single_buffer):
                return [pl.BlockSpec((bn, t_pad, D), x_map),
                        _resident_spec((D, tH), lambda h, n: (0, h),
                                       single_buffer),
                        _resident_spec((1, tH), lambda h, n: (0, h),
                                       single_buffer)]
        else:
            grid = (n_blocks,)
            x_map = lambda n: (n, 0, 0)
            o_spec = pl.BlockSpec((bn, t_pad, H), lambda n: (n, 0, 0))

            def build_in_specs(single_buffer):
                return [pl.BlockSpec((bn, t_pad, D), x_map),
                        _resident_spec((D, H), lambda n: (0, 0), single_buffer),
                        _resident_spec((1, H), lambda n: (0, 0), single_buffer)]
    else:
        kernel = _make_plain_kernel(bool(out_tanh), normalize, compute_dtype)
        args = (xp,)
        grid = (n_blocks,)
        o_spec = pl.BlockSpec((bn, t_pad, D), lambda n: (n, 0, 0))

        def build_in_specs(single_buffer):
            return [pl.BlockSpec((bn, t_pad, D), lambda n: (n, 0, 0))]

    def run(in_specs):
        return pl.pallas_call(
            kernel,
            out_shape=jax.ShapeDtypeStruct((n_pad, t_pad, H), out_dtype),
            grid_spec=pltpu.PrefetchScalarGridSpec(
                num_scalar_prefetch=0,
                grid=grid,
                in_specs=in_specs,
                out_specs=o_spec),
            compiler_params=compiler_params,
        )(*args)

    try:
        out = run(build_in_specs(True))
    except Exception:
        # Fall back to default double-buffered resident specs if this JAX
        # version rejects pipeline_mode=pl.Buffered(1).
        out = run(build_in_specs(False))

    if n_pad != N or t_pad != T:
        out = out[:N, :T]

    att_mask = jnp.ones((N, T), dtype=out.dtype)
    return out, None, att_mask


def slowfast_pooling_from_list(tensor_list, w=None, b=None, *,
                               out_mlp: bool = True, out_tanh: bool = True,
                               out_dtype=None):
    """Convenience wrapper mirroring the torch.stack(list) entry point."""
    return slowfast_pooling(jnp.stack(tensor_list, axis=0), w, b,
                            out_mlp=out_mlp, out_tanh=out_tanh,
                            out_dtype=out_dtype)


# ---------------------------------------------------------------------------
# Pure-JAX reference (mirrors the PyTorch forward, eval mode)
# ---------------------------------------------------------------------------
def _reference(x, w=None, b=None, *, out_mlp=True, out_tanh=True):
    t = x
    if out_mlp and w is not None:
        t = t @ w + b
    if out_tanh:
        t = jnp.tanh(t)
    if t.shape[1] > 1:
        norm = jnp.maximum(jnp.sqrt(jnp.sum(t * t, axis=1, keepdims=True)),
                           1e-12)
        t = t / norm
    mask = jnp.ones(t.shape[:2], dtype=t.dtype)
    return t, None, mask


if __name__ == "__main__":
    # Small synthetic config with lane-dense feature dims:
    # stack N = 8, seq T = 8, size (D) = 128, out_mlp (H) = 128.
    N, T, D, H = 8, 8, 128, 128
    key = jax.random.PRNGKey(0)
    k_x, k_w, k_b = jax.random.split(key, 3)

    x = jax.random.normal(k_x, (N, T, D), dtype=jnp.float32)   # pre-stacked
    # Deterministic nn.Linear-style init: U(-1/sqrt(D), 1/sqrt(D)).
    bound = 1.0 / (D ** 0.5)
    w = jax.random.uniform(k_w, (D, H), jnp.float32, -bound, bound)
    b = jax.random.uniform(k_b, (H,), jnp.float32, -bound, bound)

    # MLP + tanh + normalize path.
    out, none_val, att_mask = slowfast_pooling(x, w, b,
                                               out_mlp=True, out_tanh=True)
    out = jax.block_until_ready(out)
    att_mask = jax.block_until_ready(att_mask)

    ref_out, _, ref_mask = _reference(x, w, b, out_mlp=True, out_tanh=True)
    assert out.shape == (N, T, H)
    assert att_mask.shape == (N, T)
    assert none_val is None
    assert jnp.allclose(out, ref_out, atol=1e-5, rtol=1e-5)
    assert jnp.allclose(att_mask, ref_mask)

    # No-MLP path (out_mlp falsy in the torch module).
    out2, _, mask2 = slowfast_pooling(x, out_mlp=False, out_tanh=True)
    out2 = jax.block_until_ready(out2)
    ref_out2, _, ref_mask2 = _reference(x, out_mlp=False, out_tanh=True)
    assert jnp.allclose(out2, ref_out2, atol=1e-5, rtol=1e-5)
    assert jnp.allclose(mask2, ref_mask2)

    print("KERNEL_OK")
</pallas_src>

<mosaic_0001>
module attributes {stable_mosaic.version = 11 : i64} {
  func.func @kernel(%arg0: i32, %arg1: memref<8x8x128xf32, #tpu.memory_space<vmem>>, %arg2: memref<128x128xf32, #tpu.memory_space<vmem>>, %arg3: memref<1x128xf32, #tpu.memory_space<vmem>>, %arg4: memref<8x8x128xf32, #tpu.memory_space<vmem>>) attributes {dimension_semantics = [#tpu.dimension_semantics<parallel>], iteration_bounds = array<i64: 1>, scalar_prefetch = 0 : i64, scratch_operands = 0 : i64, tpu.core_type = #tpu.core_type<tc>, window_params = [{transform_indices = @transform_0, window_bounds = array<i64: 8, 8, 128>}, {pipeline_mode = #tpu.pipeline_mode<synchronous>, transform_indices = @transform_1, window_bounds = array<i64: 128, 128>}, {pipeline_mode = #tpu.pipeline_mode<synchronous>, transform_indices = @transform_2, window_bounds = array<i64: 1, 128>}, {transform_indices = @transform_3, window_bounds = array<i64: 8, 8, 128>}]} {
    %c0 = arith.constant 0 : index
    %c0_0 = arith.constant 0 : index
    %c0_1 = arith.constant 0 : index
    %0 = vector.load %arg1[%c0, %c0_0, %c0_1] : memref<8x8x128xf32, #tpu.memory_space<vmem>>, vector<8x8x128xf32>
    %1 = vector.shape_cast %0 : vector<8x8x128xf32> to vector<64x128xf32>
    %c0_2 = arith.constant 0 : index
    %c0_3 = arith.constant 0 : index
    %2 = vector.load %arg2[%c0_2, %c0_3] : memref<128x128xf32, #tpu.memory_space<vmem>>, vector<128x128xf32>
    %cst = arith.constant dense<0.000000e+00> : vector<64x128xf32>
    %3 = tpu.matmul %1, %2, %cst {dimension_numbers = #tpu.dot_dimension_numbers<[1], [0], [0], [1], [0, 0, 1, 1], [], []>} : vector<64x128xf32>, vector<128x128xf32>, vector<64x128xf32> -> vector<64x128xf32>
    %c0_4 = arith.constant 0 : index
    %c0_5 = arith.constant 0 : index
    %4 = vector.load %arg3[%c0_4, %c0_5] : memref<1x128xf32, #tpu.memory_space<vmem>>, vector<1x128xf32>
    %5 = vector.broadcast %4 : vector<1x128xf32> to vector<64x128xf32>
    %6 = arith.addf %3, %5 : vector<64x128xf32>
    %7 = math.tanh %6 : vector<64x128xf32>
    %8 = vector.shape_cast %7 : vector<64x128xf32> to vector<8x8x128xf32>
    %9 = arith.mulf %8, %8 : vector<8x8x128xf32>
    %cst_6 = arith.constant dense<0.000000e+00> : vector<8x128xf32>
    %10 = vector.multi_reduction <add>, %9, %cst_6 [1] : vector<8x8x128xf32> to vector<8x128xf32>
    %11 = vector.shape_cast %10 : vector<8x128xf32> to vector<8x1x128xf32>
    %cst_7 = arith.constant 1.000000e-24 : f32
    %12 = vector.broadcast %cst_7 : f32 to vector<8x1x128xf32>
    %13 = arith.maximumf %11, %12 : vector<8x1x128xf32>
    %14 = math.rsqrt %13 : vector<8x1x128xf32>
    %15 = vector.broadcast %14 : vector<8x1x128xf32> to vector<8x8x128xf32>
    %16 = arith.mulf %8, %15 : vector<8x8x128xf32>
    %c0_8 = arith.constant 0 : index
    %c0_9 = arith.constant 0 : index
    %c0_10 = arith.constant 0 : index
    %17 = vector.load %arg4[%c0_8, %c0_9, %c0_10] : memref<8x8x128xf32, #tpu.memory_space<vmem>>, vector<8x8x128xf32>
    tpu.vector_store %arg4[%c0_8, %c0_9, %c0_10], %16 {strides = array<i32>} : memref<8x8x128xf32, #tpu.memory_space<vmem>>, vector<8x8x128xf32>,
    return
  }
  func.func @transform_0(%arg0: i32) -> (i32, i32, i32) {
    %c0_i32 = arith.constant 0 : i32
    %c0_i32_0 = arith.constant 0 : i32
    %c0_i32_1 = arith.constant 0 : i32
    return %arg0, %c0_i32, %c0_i32_0 : i32, i32, i32
  }
  func.func @transform_1(%arg0: i32) -> (i32, i32) {
    %c0_i32 = arith.constant 0 : i32
    %c0_i32_0 = arith.constant 0 : i32
    %c0_i32_1 = arith.constant 0 : i32
    return %c0_i32, %c0_i32_0 : i32, i32
  }
  func.func @transform_2(%arg0: i32) -> (i32, i32) {
    %c0_i32 = arith.constant 0 : i32
    %c0_i32_0 = arith.constant 0 : i32
    %c0_i32_1 = arith.constant 0 : i32
    return %c0_i32, %c0_i32_0 : i32, i32
  }
  func.func @transform_3(%arg0: i32) -> (i32, i32, i32) {
    %c0_i32 = arith.constant 0 : i32
    %c0_i32_0 = arith.constant 0 : i32
    %c0_i32_1 = arith.constant 0 : i32
    return %arg0, %c0_i32, %c0_i32_0 : i32, i32, i32
  }
}

module attributes {stable_mosaic.version = 11 : i64} {
  func.func @kernel(%arg0: i32, %arg1: memref<8x8x128xf32, #tpu.memory_space<vmem>>, %arg2: memref<128x128xf32, #tpu.memory_space<vmem>>, %arg3: memref<1x128xf32, #tpu.memory_space<vmem>>, %arg4: memref<8x8x128xf32, #tpu.memory_space<vmem>>) attributes {dimension_semantics = [#tpu.dimension_semantics<parallel>], iteration_bounds = array<i64: 1>, scalar_prefetch = 0 : i64, scratch_operands = 0 : i64, tpu.core_type = #tpu.core_type<tc>, window_params = [{transform_indices = @transform_0, window_bounds = array<i64: 8, 8, 128>}, {pipeline_mode = #tpu.pipeline_mode<synchronous>, transform_indices = @transform_1, window_bounds = array<i64: 128, 128>}, {pipeline_mode = #tpu.pipeline_mode<synchronous>, transform_indices = @transform_2, window_bounds = array<i64: 1, 128>}, {transform_indices = @transform_3, window_bounds = array<i64: 8, 8, 128>}]} {
    %c0 = arith.constant 0 : index
    %c0_0 = arith.constant 0 : index
    %c0_1 = arith.constant 0 : index
    %0 = vector.load %arg1[%c0, %c0_0, %c0_1] : memref<8x8x128xf32, #tpu.memory_space<vmem>>, vector<8x8x128xf32>
    %1 = vector.shape_cast %0 : vector<8x8x128xf32> to vector<64x128xf32>
    %c0_2 = arith.constant 0 : index
    %c0_3 = arith.constant 0 : index
    %2 = vector.load %arg2[%c0_2, %c0_3] : memref<128x128xf32, #tpu.memory_space<vmem>>, vector<128x128xf32>
    %cst = arith.constant dense<0.000000e+00> : vector<64x128xf32>
    %3 = tpu.matmul %1, %2, %cst {dimension_numbers = #tpu.dot_dimension_numbers<[1], [0], [0], [1], [0, 0, 1, 1], [], []>} : vector<64x128xf32>, vector<128x128xf32>, vector<64x128xf32> -> vector<64x128xf32>
    %c0_4 = arith.constant 0 : index
    %c0_5 = arith.constant 0 : index
    %4 = vector.load %arg3[%c0_4, %c0_5] : memref<1x128xf32, #tpu.memory_space<vmem>>, vector<1x128xf32>
    %5 = vector.broadcast %4 : vector<1x128xf32> to vector<64x128xf32>
    %6 = arith.addf %3, %5 : vector<64x128xf32>
    %7 = math.tanh %6 : vector<64x128xf32>
    %8 = vector.shape_cast %7 : vector<64x128xf32> to vector<8x8x128xf32>
    %9 = arith.mulf %8, %8 : vector<8x8x128xf32>
    %cst_6 = arith.constant dense<0.000000e+00> : vector<8x128xf32>
    %10 = vector.multi_reduction <add>, %9, %cst_6 [1] : vector<8x8x128xf32> to vector<8x128xf32>
    %11 = vector.shape_cast %10 : vector<8x128xf32> to vector<8x1x128xf32>
    %cst_7 = arith.constant 1.000000e-24 : f32
    %12 = vector.broadcast %cst_7 : f32 to vector<8x1x128xf32>
    %13 = arith.maximumf %11, %12 : vector<8x1x128xf32>
    %14 = math.rsqrt %13 : vector<8x1x128xf32>
    %15 = vector.broadcast %14 : vector<8x1x128xf32> to vector<8x8x128xf32>
    %16 = arith.mulf %8, %15 : vector<8x8x128xf32>
    %c0_8 = arith.constant 0 : index
    %c0_9 = arith.constant 0 : index
    %c0_10 = arith.constant 0 : index
    %17 = vector.load %arg4[%c0_8, %c0_9, %c0_10] : memref<8x8x128xf32, #tpu.memory_space<vmem>>, vector<8x8x128xf32>
    tpu.vector_store %arg4[%c0_8, %c0_9, %c0_10], %16 {strides = array<i32>} : memref<8x8x128xf32, #tpu.memory_space<vmem>>, vector<8x8x128xf32>,
    return
  }
  func.func @transform_0(%arg0: i32) -> (i32, i32, i32) {
    %c0_i32 = arith.constant 0 : i32
    %c0_i32_0 = arith.constant 0 : i32
    %c0_i32_1 = arith.constant 0 : i32
    return %arg0, %c0_i32, %c0_i32_0 : i32, i32, i32
  }
  func.func @transform_1(%arg0: i32) -> (i32, i32) {
    %c0_i32 = arith.constant 0 : i32
    %c0_i32_0 = arith.constant 0 : i32
    %c0_i32_1 = arith.constant 0 : i32
    return %c0_i32, %c0_i32_0 : i32, i32
  }
  func.func @transform_2(%arg0: i32) -> (i32, i32) {
    %c0_i32 = arith.constant 0 : i32
    %c0_i32_0 = arith.constant 0 : i32
    %c0_i32_1 = arith.constant 0 : i32
    return %c0_i32, %c0_i32_0 : i32, i32
  }
  func.func @transform_3(%arg0: i32) -> (i32, i32, i32) {
    %c0_i32 = arith.constant 0 : i32
    %c0_i32_0 = arith.constant 0 : i32
    %c0_i32_1 = arith.constant 0 : i32
    return %arg0, %c0_i32, %c0_i32_0 : i32, i32, i32
  }
}

</mosaic_0001>

<llo_original>
// kernel: tpu_custom_call.1
$region0: #{tpu_custom_call.1}
  #allocation0 [shape = 'u32[]', space=smem, size = 0x4, offset = 0x4, fixed_abs, tag = 'smem constant byte address 0x4 - core index']
  #allocation1 [shape = 'u32[144,128]{1,0:T(1,128)}', space=vmem, size = 0x12000, scoped, tag = 'internal scratch']
  %s0 = inlined_call_operand.hbm [shape: f32[8,8,128], index: 0, kind: input, shape index: {}]
  %s1 = inlined_call_operand.hbm [shape: f32[128,128], index: 1, kind: input, shape index: {}]
  %s2 = inlined_call_operand.vmem [shape: f32[1,128], index: 2, kind: input, shape index: {}]
  %s3 = inlined_call_operand.hbm [shape: f32[8,8,128], index: 3, kind: output, shape index: {}]
  %s4 = sld [smem:[#allocation0]]
  $region30: #{tpu_custom_call.1} parent=0
    _
  %s6 = ssub.s32 1, %s4
  %s7 = scalar_select 0, %s6, %s4
  $region1: #{tpu_custom_call.1} parent=0
    #allocation2 [shape = 'u8[32768]{0}', space=vmem, size = 0x8000, scoped, tag = 'input window, operand 0, single buffered']
    #allocation3 [shape = 's32[1]{0}', space=sflag, size = 0x4, scoped, tag = 'scoped memory for tpu_custom_call.1']
    #allocation4 [shape = 's32[1]{0}', space=sflag, size = 0x4, scoped, tag = 'scoped memory for tpu_custom_call.1']
    #allocation5 [shape = 'u8[65536]{0}', space=vmem, size = 0x10000, scoped, tag = 'input window, operand 1, single buffered']
    #allocation6 [shape = 's32[1]{0}', space=sflag, size = 0x4, scoped, tag = 'scoped memory for tpu_custom_call.1']
    #allocation7 [shape = 'u8[32768]{0}', space=vmem, size = 0x8000, scoped, tag = 'output window, operand 0, single buffered']
    %8 = vsyncpa [#allocation3], 0
    %9 = vsyncpa [#allocation6], 0
    %10 = vsyncpa [#allocation4], 0
    // Predicated region
    $region2: #{tpu_custom_call.1} parent=1 // pred_check
      _
    $region3: #{tpu_custom_call.1} parent=1 // pred_check_branch
      %12 = sbr.rel (0) target = $region5
    $region4: #{tpu_custom_call.1} parent=1 // pred_region
      %s14 = ssub.s32 1024, 1024
      %15 = vsyncadd [#allocation3], %s14
      %s16 = sshll.u32 [#allocation2], 4
      %s17 = int_to_ptr.vmem [resolvable:$true] %s16
      %22 = dma.hbm_to_vmem [thread:$0]  %s0, 1024, %s17, [#allocation3], 128, 128, 8
    $region5: #{tpu_custom_call.1} parent=1 // pred_fallthru
      _
    // Predicated region
    $region6: #{tpu_custom_call.1} parent=1 // pred_check
      _
    $region7: #{tpu_custom_call.1} parent=1 // pred_check_branch
      %24 = sbr.rel (0) target = $region9
    $region8: #{tpu_custom_call.1} parent=1 // pred_region
      %s26 = ssub.s32 2048, 2048
      %27 = vsyncadd [#allocation6], %s26
      %s28 = sshll.u32 [#allocation5], 4
      %s29 = int_to_ptr.vmem [resolvable:$true] %s28
      %34 = dma.hbm_to_vmem [thread:$0]  %s1, 2048, %s29, [#allocation6], 128, 128, 8
    $region9: #{tpu_custom_call.1} parent=1 // pred_fallthru
      _
    // Predicated region
    $region10: #{tpu_custom_call.1} parent=1 // pred_check
      _
    $region11: #{tpu_custom_call.1} parent=1 // pred_check_branch
      %36 = sbr.rel (0) target = $region13
    $region12: #{tpu_custom_call.1} parent=1 // pred_region
      _
    $region13: #{tpu_custom_call.1} parent=1 // pred_fallthru
      _
    // Predicated region
    $region14: #{tpu_custom_call.1} parent=1 // pred_check
      _
    $region15: #{tpu_custom_call.1} parent=1 // pred_check_branch
      %38 = sbr.rel (0) target = $region17
    $region16: #{tpu_custom_call.1} parent=1 // pred_region
      %39 = dma.done [#allocation3], 1024
    $region17: #{tpu_custom_call.1} parent=1 // pred_fallthru
      _
    // Predicated region
    $region18: #{tpu_custom_call.1} parent=1 // pred_check
      _
    $region19: #{tpu_custom_call.1} parent=1 // pred_check_branch
      %41 = sbr.rel (0) target = $region21
    $region20: #{tpu_custom_call.1} parent=1 // pred_region
      %42 = dma.done [#allocation6], 2048
    $region21: #{tpu_custom_call.1} parent=1 // pred_fallthru
      _
    %v43 = vld [vmem:[#allocation2] sm:$0xff]
    %v44 = vld [vmem:[#allocation2 + $0x8] sm:$0xff]
    %v45 = vld [vmem:[#allocation2 + $0x10] sm:$0xff]
    %v46 = vld [vmem:[#allocation2 + $0x18] sm:$0xff]
    %v47 = vld [vmem:[#allocation2 + $0x20] sm:$0xff]
    %v48 = vld [vmem:[#allocation2 + $0x28] sm:$0xff]
    %v49 = vld [vmem:[#allocation2 + $0x30] sm:$0xff]
    %v50 = vld [vmem:[#allocation2 + $0x38] sm:$0xff]
    %v51 = vld [vmem:[#allocation5] sm:$0xff]
    %v52 = vld [vmem:[#allocation5 + $0x8] sm:$0xff]
    %v53 = vld [vmem:[#allocation5 + $0x10] sm:$0xff]
    %v54 = vld [vmem:[#allocation5 + $0x18] sm:$0xff]
    %v55 = vld [vmem:[#allocation5 + $0x20] sm:$0xff]
    %v56 = vld [vmem:[#allocation5 + $0x28] sm:$0xff]
    %v57 = vld [vmem:[#allocation5 + $0x30] sm:$0xff]
    %v58 = vld [vmem:[#allocation5 + $0x38] sm:$0xff]
    %v59 = vld [vmem:[#allocation5 + $0x40] sm:$0xff]
    %v60 = vld [vmem:[#allocation5 + $0x48] sm:$0xff]
    %v61 = vld [vmem:[#allocation5 + $0x50] sm:$0xff]
    %v62 = vld [vmem:[#allocation5 + $0x58] sm:$0xff]
    %v63 = vld [vmem:[#allocation5 + $0x60] sm:$0xff]
    %v64 = vld [vmem:[#allocation5 + $0x68] sm:$0xff]
    %v65 = vld [vmem:[#allocation5 + $0x70] sm:$0xff]
    %v66 = vld [vmem:[#allocation5 + $0x78] sm:$0xff]
    %v67 = vld [vmem:[%s2] sm:$0x1]
    %v69 = vlaneseq
    %v70 = vshrl.u32 %v69, 7
    %v71 = vsub.s32 0, %v70
    %v72 = vrot.slane %v67, %v71
    %74 = vmatprep.subr.mxu0 0.0
    %75 = vmatpush1.msra.mxu0 %v51
    %76 = vmatprep.subr.mxu0 0.0
    %77 = vmatpush1.msra.mxu0 %v52
    %78 = vmatprep.subr.mxu0 0.0
    %79 = vmatpush1.msra.mxu0 %v53
    %80 = vmatprep.subr.mxu0 0.0
    %81 = vmatpush1.msra.mxu0 %v54
    %82 = vmatprep.subr.mxu0 0.0
    %83 = vmatpush1.msra.mxu0 %v55
    %84 = vmatprep.subr.mxu0 0.0
    %85 = vmatpush1.msra.mxu0 %v56
    %86 = vmatprep.subr.mxu0 0.0
    %87 = vmatpush1.msra.mxu0 %v57
    %88 = vmatprep.subr.mxu0 0.0
    %89 = vmatpush1.msra.mxu0 %v58
    %90 = vmatprep.subr.mxu0 0.0
    %91 = vmatpush1.msra.mxu0 %v59
    %92 = vmatprep.subr.mxu0 0.0
    %93 = vmatpush1.msra.mxu0 %v60
    %94 = vmatprep.subr.mxu0 0.0
    %95 = vmatpush1.msra.mxu0 %v61
    %96 = vmatprep.subr.mxu0 0.0
    %97 = vmatpush1.msra.mxu0 %v62
    %98 = vmatprep.subr.mxu0 0.0
    %99 = vmatpush1.msra.mxu0 %v63
    %100 = vmatprep.subr.mxu0 0.0
    %101 = vmatpush1.msra.mxu0 %v64
    %102 = vmatprep.subr.mxu0 0.0
    %103 = vmatpush1.msra.mxu0 %v65
    %104 = vmatprep.subr.mxu0 0.0
    %105 = vmatpush1.msra.mxu0 %v66
    %106 = vmatprep.subr.mxu0 0.0
    %107 = vmatpush1.msra.mxu0 0.0
    %108 = vmatprep.subr.mxu0 0.0
    %109 = vmatpush1.msra.mxu0 0.0
    %110 = vmatprep.subr.mxu0 0.0
    %111 = vmatpush1.msra.mxu0 0.0
    %112 = vmatprep.subr.mxu0 0.0
    %113 = vmatpush1.msra.mxu0 0.0
    %114 = vmatprep.subr.mxu0 0.0
    %115 = vmatpush1.msra.mxu0 0.0
    %116 = vmatprep.subr.mxu0 0.0
    %117 = vmatpush1.msra.mxu0 0.0
    %118 = vmatprep.subr.mxu0 0.0
    %119 = vmatpush1.msra.mxu0 0.0
    %120 = vmatprep.subr.mxu0 0.0
    %121 = vmatpush1.msra.mxu0 0.0
    %122 = vmatprep.subr.mxu0 0.0
    %123 = vmatpush1.msra.mxu0 0.0
    %124 = vmatprep.subr.mxu0 0.0
    %125 = vmatpush1.msra.mxu0 0.0
    %126 = vmatprep.subr.mxu0 0.0
    %127 = vmatpush1.msra.mxu0 0.0
    %128 = vmatprep.subr.mxu0 0.0
    %129 = vmatpush1.msra.mxu0 0.0
    %130 = vmatprep.subr.mxu0 0.0
    %131 = vmatpush1.msra.mxu0 0.0
    %132 = vmatprep.subr.mxu0 0.0
    %133 = vmatpush1.msra.mxu0 0.0
    %134 = vmatprep.subr.mxu0 0.0
    %135 = vmatpush1.msra.mxu0 0.0
    %136 = vmatprep.subr.mxu0 0.0
    %137 = vmatpush1.msra.mxu0 0.0
    %138 = vmatprep.mubr.f32.mxu0 0.0
    %139 = vmatmul.mubr.f32.gmra.mrb[0].mxu0 %v43
    %v140 = vpop.f32.mrb[0].mxu0
    %v141 = vadd.f32 %v72, %v140
    %v142 = vpop.f32.mrb[0].mxu0
    %143 = vmatprep.mubr.f32.mxu0 0.0
    %144 = vmatmul.mubr.f32.gmra.mrb[0].mxu0 %v44
    %v145 = vpop.f32.mrb[0].mxu0
    %v146 = vadd.f32 %v72, %v145
    %v147 = vpop.f32.mrb[0].mxu0
    %148 = vmatprep.mubr.f32.mxu0 0.0
    %149 = vmatmul.mubr.f32.gmra.mrb[0].mxu0 %v45
    %v150 = vpop.f32.mrb[0].mxu0
    %v151 = vadd.f32 %v72, %v150
    %v152 = vpop.f32.mrb[0].mxu0
    %153 = vmatprep.mubr.f32.mxu0 0.0
    %154 = vmatmul.mubr.f32.gmra.mrb[0].mxu0 %v46
    %v155 = vpop.f32.mrb[0].mxu0
    %v156 = vadd.f32 %v72, %v155
    %v157 = vpop.f32.mrb[0].mxu0
    %158 = vmatprep.mubr.f32.mxu0 0.0
    %159 = vmatmul.mubr.f32.gmra.mrb[0].mxu0 %v47
    %v160 = vpop.f32.mrb[0].mxu0
    %v161 = vadd.f32 %v72, %v160
    %v162 = vpop.f32.mrb[0].mxu0
    %163 = vmatprep.mubr.f32.mxu0 0.0
    %164 = vmatmul.mubr.f32.gmra.mrb[0].mxu0 %v48
    %v165 = vpop.f32.mrb[0].mxu0
    %v166 = vadd.f32 %v72, %v165
    %v167 = vpop.f32.mrb[0].mxu0
    %168 = vmatprep.mubr.f32.mxu0 0.0
    %169 = vmatmul.mubr.f32.gmra.mrb[0].mxu0 %v49
    %v170 = vpop.f32.mrb[0].mxu0
    %v171 = vadd.f32 %v72, %v170
    %v172 = vpop.f32.mrb[0].mxu0
    %173 = vmatprep.mubr.f32.mxu0 0.0
    %174 = vmatmul.mubr.f32.gmra.mrb[0].mxu0 %v50
    %v175 = vpop.f32.mrb[0].mxu0
    %v176 = vadd.f32 %v72, %v175
    %v177 = vpop.f32.mrb[0].mxu0
    %178 = vdwg.mxu0
    %v179 = vtanh.pop %v141
    %v180 = vtanh.pop %v146
    %v181 = vtanh.pop %v151
    %v182 = vtanh.pop %v156
    %v183 = vtanh.pop %v161
    %v184 = vtanh.pop %v166
    %v185 = vtanh.pop %v171
    %v186 = vtanh.pop %v176
    %v187 = vmul.f32 %v179, %v179
    %v188 = vmul.f32 %v180, %v180
    %v189 = vmul.f32 %v181, %v181
    %v190 = vmul.f32 %v182, %v182
    %v191 = vmul.f32 %v183, %v183
    %v192 = vmul.f32 %v184, %v184
    %v193 = vmul.f32 %v185, %v185
    %v194 = vmul.f32 %v186, %v186
    %v195 = vrot.slane %v187, 4
    %v196 = vadd.f32 %v187, %v195
    %v197 = vrot.slane %v196, 2
    %v198 = vadd.f32 %v196, %v197
    %v199 = vrot.slane %v198, 1
    %v200 = vadd.f32 %v198, %v199
    %v201 = vrot.slane %v188, 4
    %v202 = vadd.f32 %v188, %v201
    %v203 = vrot.slane %v202, 2
    %v204 = vadd.f32 %v202, %v203
    %v205 = vrot.slane %v204, 1
    %v206 = vadd.f32 %v204, %v205
    %v207 = vrot.slane %v189, 4
    %v208 = vadd.f32 %v189, %v207
    %v209 = vrot.slane %v208, 2
    %v210 = vadd.f32 %v208, %v209
    %v211 = vrot.slane %v210, 1
    %v212 = vadd.f32 %v210, %v211
    %v213 = vrot.slane %v190, 4
    %v214 = vadd.f32 %v190, %v213
    %v215 = vrot.slane %v214, 2
    %v216 = vadd.f32 %v214, %v215
    %v217 = vrot.slane %v216, 1
    %v218 = vadd.f32 %v216, %v217
    %v219 = vrot.slane %v191, 4
    %v220 = vadd.f32 %v191, %v219
    %v221 = vrot.slane %v220, 2
    %v222 = vadd.f32 %v220, %v221
    %v223 = vrot.slane %v222, 1
    %v224 = vadd.f32 %v222, %v223
    %v225 = vrot.slane %v192, 4
    %v226 = vadd.f32 %v192, %v225
    %v227 = vrot.slane %v226, 2
    %v228 = vadd.f32 %v226, %v227
    %v229 = vrot.slane %v228, 1
    %v230 = vadd.f32 %v228, %v229
    %v231 = vrot.slane %v193, 4
    %v232 = vadd.f32 %v193, %v231
    %v233 = vrot.slane %v232, 2
    %v234 = vadd.f32 %v232, %v233
    %v235 = vrot.slane %v234, 1
    %v236 = vadd.f32 %v234, %v235
    %v237 = vrot.slane %v194, 4
    %v238 = vadd.f32 %v194, %v237
    %v239 = vrot.slane %v238, 2
    %v240 = vadd.f32 %v238, %v239
    %v241 = vrot.slane %v240, 1
    %v242 = vadd.f32 %v240, %v241
    %v243 = vmax.f32 %v200, 1e-24
    %v244 = vmax.f32 %v206, 1e-24
    %v245 = vmax.f32 %v212, 1e-24
    %v246 = vmax.f32 %v218, 1e-24
    %v247 = vmax.f32 %v224, 1e-24
    %v248 = vmax.f32 %v230, 1e-24
    %v249 = vmax.f32 %v236, 1e-24
    %v250 = vmax.f32 %v242, 1e-24
    %v251 = vrsqrt.pop %v243
    %v252 = vrsqrt.pop %v244
    %v253 = vrsqrt.pop %v245
    %v254 = vrsqrt.pop %v246
    %v255 = vrsqrt.pop %v247
    %v256 = vrsqrt.pop %v248
    %v257 = vrsqrt.pop %v249
    %v258 = vrsqrt.pop %v250
    %v259 = vmul.f32 %v179, %v251
    %v260 = vmul.f32 %v180, %v252
    %v261 = vmul.f32 %v181, %v253
    %v262 = vmul.f32 %v182, %v254
    %v263 = vmul.f32 %v183, %v255
    %v264 = vmul.f32 %v184, %v256
    %v265 = vmul.f32 %v185, %v257
    %v266 = vmul.f32 %v186, %v258
    %267 = vst [vmem:[#allocation7] sm:$0xff] %v259
    %268 = vst [vmem:[#allocation7 + $0x8] sm:$0xff] %v260
    %269 = vst [vmem:[#allocation7 + $0x10] sm:$0xff] %v261
    %270 = vst [vmem:[#allocation7 + $0x18] sm:$0xff] %v262
    %271 = vst [vmem:[#allocation7 + $0x20] sm:$0xff] %v263
    %272 = vst [vmem:[#allocation7 + $0x28] sm:$0xff] %v264
    %273 = vst [vmem:[#allocation7 + $0x30] sm:$0xff] %v265
    %274 = vst [vmem:[#allocation7 + $0x38] sm:$0xff] %v266
    // Predicated region
    $region22: #{tpu_custom_call.1} parent=1 // pred_check
      _
    $region23: #{tpu_custom_call.1} parent=1 // pred_check_branch
      %276 = sbr.rel (0) target = $region25
    $region24: #{tpu_custom_call.1} parent=1 // pred_region
      %s278 = ssub.s32 1024, 1024
      %279 = vsyncadd [#allocation4], %s278
      %s280 = sshll.u32 [#allocation7], 4
      %s281 = int_to_ptr.vmem [resolvable:$true] %s280
      %286 = dma.vmem_to_hbm [thread:$0]  %s281, 1024, %s3, [#allocation4], 128, 128, 8
    $region25: #{tpu_custom_call.1} parent=1 // pred_fallthru
      _
    // Predicated region
    $region26: #{tpu_custom_call.1} parent=1 // pred_check
      _
    $region27: #{tpu_custom_call.1} parent=1 // pred_check_branch
      %288 = sbr.rel (0) target = $region29
    $region28: #{tpu_custom_call.1} parent=1 // pred_region
      %289 = dma.done [#allocation4], 1024
    $region29: #{tpu_custom_call.1} parent=1 // pred_fallthru
      _
    %290 = vsyncpa [#allocation3], 1
    %291 = vsyncpa [#allocation6], 1
    %292 = vsyncpa [#allocation4], 1

// kernel: tpu_custom_call.1
$region0: #{tpu_custom_call.1}
  #allocation0 [shape = 'u32[]', space=smem, size = 0x4, offset = 0x4, fixed_abs, tag = 'smem constant byte address 0x4 - core index']
  #allocation1 [shape = 'u32[144,128]{1,0:T(1,128)}', space=vmem, size = 0x12000, scoped, tag = 'internal scratch']
  %s0 = inlined_call_operand.hbm [shape: f32[8,8,128], index: 0, kind: input, shape index: {}]
  %s1 = inlined_call_operand.hbm [shape: f32[128,128], index: 1, kind: input, shape index: {}]
  %s2 = inlined_call_operand.vmem [shape: f32[1,128], index: 2, kind: input, shape index: {}]
  %s3 = inlined_call_operand.hbm [shape: f32[8,8,128], index: 3, kind: output, shape index: {}]
  %s4 = sld [smem:[#allocation0]]
  $region30: #{tpu_custom_call.1} parent=0
    _
  %s6 = ssub.s32 1, %s4
  %s7 = scalar_select 0, %s6, %s4
  $region1: #{tpu_custom_call.1} parent=0
    #allocation2 [shape = 'u8[32768]{0}', space=vmem, size = 0x8000, scoped, tag = 'input window, operand 0, single buffered']
    #allocation3 [shape = 's32[1]{0}', space=sflag, size = 0x4, scoped, tag = 'scoped memory for tpu_custom_call.1']
    #allocation4 [shape = 's32[1]{0}', space=sflag, size = 0x4, scoped, tag = 'scoped memory for tpu_custom_call.1']
    #allocation5 [shape = 'u8[65536]{0}', space=vmem, size = 0x10000, scoped, tag = 'input window, operand 1, single buffered']
    #allocation6 [shape = 's32[1]{0}', space=sflag, size = 0x4, scoped, tag = 'scoped memory for tpu_custom_call.1']
    #allocation7 [shape = 'u8[32768]{0}', space=vmem, size = 0x8000, scoped, tag = 'output window, operand 0, single buffered']
    %8 = vsyncpa [#allocation3], 0
    %9 = vsyncpa [#allocation6], 0
    %10 = vsyncpa [#allocation4], 0
    // Predicated region
    $region2: #{tpu_custom_call.1} parent=1 // pred_check
      _
    $region3: #{tpu_custom_call.1} parent=1 // pred_check_branch
      %12 = sbr.rel (0) target = $region5
    $region4: #{tpu_custom_call.1} parent=1 // pred_region
      %s14 = ssub.s32 1024, 1024
      %15 = vsyncadd [#allocation3], %s14
      %s16 = sshll.u32 [#allocation2], 4
      %s17 = int_to_ptr.vmem [resolvable:$true] %s16
      %22 = dma.hbm_to_vmem [thread:$0]  %s0, 1024, %s17, [#allocation3], 128, 128, 8
    $region5: #{tpu_custom_call.1} parent=1 // pred_fallthru
      _
    // Predicated region
    $region6: #{tpu_custom_call.1} parent=1 // pred_check
      _
    $region7: #{tpu_custom_call.1} parent=1 // pred_check_branch
      %24 = sbr.rel (0) target = $region9
    $region8: #{tpu_custom_call.1} parent=1 // pred_region
      %s26 = ssub.s32 2048, 2048
      %27 = vsyncadd [#allocation6], %s26
      %s28 = sshll.u32 [#allocation5], 4
      %s29 = int_to_ptr.vmem [resolvable:$true] %s28
      %34 = dma.hbm_to_vmem [thread:$0]  %s1, 2048, %s29, [#allocation6], 128, 128, 8
    $region9: #{tpu_custom_call.1} parent=1 // pred_fallthru
      _
    // Predicated region
    $region10: #{tpu_custom_call.1} parent=1 // pred_check
      _
    $region11: #{tpu_custom_call.1} parent=1 // pred_check_branch
      %36 = sbr.rel (0) target = $region13
    $region12: #{tpu_custom_call.1} parent=1 // pred_region
      _
    $region13: #{tpu_custom_call.1} parent=1 // pred_fallthru
      _
    // Predicated region
    $region14: #{tpu_custom_call.1} parent=1 // pred_check
      _
    $region15: #{tpu_custom_call.1} parent=1 // pred_check_branch
      %38 = sbr.rel (0) target = $region17
    $region16: #{tpu_custom_call.1} parent=1 // pred_region
      %39 = dma.done [#allocation3], 1024
    $region17: #{tpu_custom_call.1} parent=1 // pred_fallthru
      _
    // Predicated region
    $region18: #{tpu_custom_call.1} parent=1 // pred_check
      _
    $region19: #{tpu_custom_call.1} parent=1 // pred_check_branch
      %41 = sbr.rel (0) target = $region21
    $region20: #{tpu_custom_call.1} parent=1 // pred_region
      %42 = dma.done [#allocation6], 2048
    $region21: #{tpu_custom_call.1} parent=1 // pred_fallthru
      _
    %v43 = vld [vmem:[#allocation2] sm:$0xff]
    %v44 = vld [vmem:[#allocation2 + $0x8] sm:$0xff]
    %v45 = vld [vmem:[#allocation2 + $0x10] sm:$0xff]
    %v46 = vld [vmem:[#allocation2 + $0x18] sm:$0xff]
    %v47 = vld [vmem:[#allocation2 + $0x20] sm:$0xff]
    %v48 = vld [vmem:[#allocation2 + $0x28] sm:$0xff]
    %v49 = vld [vmem:[#allocation2 + $0x30] sm:$0xff]
    %v50 = vld [vmem:[#allocation2 + $0x38] sm:$0xff]
    %v51 = vld [vmem:[#allocation5] sm:$0xff]
    %v52 = vld [vmem:[#allocation5 + $0x8] sm:$0xff]
    %v53 = vld [vmem:[#allocation5 + $0x10] sm:$0xff]
    %v54 = vld [vmem:[#allocation5 + $0x18] sm:$0xff]
    %v55 = vld [vmem:[#allocation5 + $0x20] sm:$0xff]
    %v56 = vld [vmem:[#allocation5 + $0x28] sm:$0xff]
    %v57 = vld [vmem:[#allocation5 + $0x30] sm:$0xff]
    %v58 = vld [vmem:[#allocation5 + $0x38] sm:$0xff]
    %v59 = vld [vmem:[#allocation5 + $0x40] sm:$0xff]
    %v60 = vld [vmem:[#allocation5 + $0x48] sm:$0xff]
    %v61 = vld [vmem:[#allocation5 + $0x50] sm:$0xff]
    %v62 = vld [vmem:[#allocation5 + $0x58] sm:$0xff]
    %v63 = vld [vmem:[#allocation5 + $0x60] sm:$0xff]
    %v64 = vld [vmem:[#allocation5 + $0x68] sm:$0xff]
    %v65 = vld [vmem:[#allocation5 + $0x70] sm:$0xff]
    %v66 = vld [vmem:[#allocation5 + $0x78] sm:$0xff]
    %v67 = vld [vmem:[%s2] sm:$0x1]
    %v69 = vlaneseq
    %v70 = vshrl.u32 %v69, 7
    %v71 = vsub.s32 0, %v70
    %v72 = vrot.slane %v67, %v71
    %74 = vmatprep.subr.mxu0 0.0
    %75 = vmatpush1.msra.mxu0 %v51
    %76 = vmatprep.subr.mxu0 0.0
    %77 = vmatpush1.msra.mxu0 %v52
    %78 = vmatprep.subr.mxu0 0.0
    %79 = vmatpush1.msra.mxu0 %v53
    %80 = vmatprep.subr.mxu0 0.0
    %81 = vmatpush1.msra.mxu0 %v54
    %82 = vmatprep.subr.mxu0 0.0
    %83 = vmatpush1.msra.mxu0 %v55
    %84 = vmatprep.subr.mxu0 0.0
    %85 = vmatpush1.msra.mxu0 %v56
    %86 = vmatprep.subr.mxu0 0.0
    %87 = vmatpush1.msra.mxu0 %v57
    %88 = vmatprep.subr.mxu0 0.0
    %89 = vmatpush1.msra.mxu0 %v58
    %90 = vmatprep.subr.mxu0 0.0
    %91 = vmatpush1.msra.mxu0 %v59
    %92 = vmatprep.subr.mxu0 0.0
    %93 = vmatpush1.msra.mxu0 %v60
    %94 = vmatprep.subr.mxu0 0.0
    %95 = vmatpush1.msra.mxu0 %v61
    %96 = vmatprep.subr.mxu0 0.0
    %97 = vmatpush1.msra.mxu0 %v62
    %98 = vmatprep.subr.mxu0 0.0
    %99 = vmatpush1.msra.mxu0 %v63
    %100 = vmatprep.subr.mxu0 0.0
    %101 = vmatpush1.msra.mxu0 %v64
    %102 = vmatprep.subr.mxu0 0.0
    %103 = vmatpush1.msra.mxu0 %v65
    %104 = vmatprep.subr.mxu0 0.0
    %105 = vmatpush1.msra.mxu0 %v66
    %106 = vmatprep.subr.mxu0 0.0
    %107 = vmatpush1.msra.mxu0 0.0
    %108 = vmatprep.subr.mxu0 0.0
    %109 = vmatpush1.msra.mxu0 0.0
    %110 = vmatprep.subr.mxu0 0.0
    %111 = vmatpush1.msra.mxu0 0.0
    %112 = vmatprep.subr.mxu0 0.0
    %113 = vmatpush1.msra.mxu0 0.0
    %114 = vmatprep.subr.mxu0 0.0
    %115 = vmatpush1.msra.mxu0 0.0
    %116 = vmatprep.subr.mxu0 0.0
    %117 = vmatpush1.msra.mxu0 0.0
    %118 = vmatprep.subr.mxu0 0.0
    %119 = vmatpush1.msra.mxu0 0.0
    %120 = vmatprep.subr.mxu0 0.0
    %121 = vmatpush1.msra.mxu0 0.0
    %122 = vmatprep.subr.mxu0 0.0
    %123 = vmatpush1.msra.mxu0 0.0
    %124 = vmatprep.subr.mxu0 0.0
    %125 = vmatpush1.msra.mxu0 0.0
    %126 = vmatprep.subr.mxu0 0.0
    %127 = vmatpush1.msra.mxu0 0.0
    %128 = vmatprep.subr.mxu0 0.0
    %129 = vmatpush1.msra.mxu0 0.0
    %130 = vmatprep.subr.mxu0 0.0
    %131 = vmatpush1.msra.mxu0 0.0
    %132 = vmatprep.subr.mxu0 0.0
    %133 = vmatpush1.msra.mxu0 0.0
    %134 = vmatprep.subr.mxu0 0.0
    %135 = vmatpush1.msra.mxu0 0.0
    %136 = vmatprep.subr.mxu0 0.0
    %137 = vmatpush1.msra.mxu0 0.0
    %138 = vmatprep.mubr.f32.mxu0 0.0
    %139 = vmatmul.mubr.f32.gmra.mrb[0].mxu0 %v43
    %v140 = vpop.f32.mrb[0].mxu0
    %v141 = vadd.f32 %v72, %v140
    %v142 = vpop.f32.mrb[0].mxu0
    %143 = vmatprep.mubr.f32.mxu0 0.0
    %144 = vmatmul.mubr.f32.gmra.mrb[0].mxu0 %v44
    %v145 = vpop.f32.mrb[0].mxu0
    %v146 = vadd.f32 %v72, %v145
    %v147 = vpop.f32.mrb[0].mxu0
    %148 = vmatprep.mubr.f32.mxu0 0.0
    %149 = vmatmul.mubr.f32.gmra.mrb[0].mxu0 %v45
    %v150 = vpop.f32.mrb[0].mxu0
    %v151 = vadd.f32 %v72, %v150
    %v152 = vpop.f32.mrb[0].mxu0
    %153 = vmatprep.mubr.f32.mxu0 0.0
    %154 = vmatmul.mubr.f32.gmra.mrb[0].mxu0 %v46
    %v155 = vpop.f32.mrb[0].mxu0
    %v156 = vadd.f32 %v72, %v155
    %v157 = vpop.f32.mrb[0].mxu0
    %158 = vmatprep.mubr.f32.mxu0 0.0
    %159 = vmatmul.mubr.f32.gmra.mrb[0].mxu0 %v47
    %v160 = vpop.f32.mrb[0].mxu0
    %v161 = vadd.f32 %v72, %v160
    %v162 = vpop.f32.mrb[0].mxu0
    %163 = vmatprep.mubr.f32.mxu0 0.0
    %164 = vmatmul.mubr.f32.gmra.mrb[0].mxu0 %v48
    %v165 = vpop.f32.mrb[0].mxu0
    %v166 = vadd.f32 %v72, %v165
    %v167 = vpop.f32.mrb[0].mxu0
    %168 = vmatprep.mubr.f32.mxu0 0.0
    %169 = vmatmul.mubr.f32.gmra.mrb[0].mxu0 %v49
    %v170 = vpop.f32.mrb[0].mxu0
    %v171 = vadd.f32 %v72, %v170
    %v172 = vpop.f32.mrb[0].mxu0
    %173 = vmatprep.mubr.f32.mxu0 0.0
    %174 = vmatmul.mubr.f32.gmra.mrb[0].mxu0 %v50
    %v175 = vpop.f32.mrb[0].mxu0
    %v176 = vadd.f32 %v72, %v175
    %v177 = vpop.f32.mrb[0].mxu0
    %178 = vdwg.mxu0
    %v179 = vtanh.pop %v141
    %v180 = vtanh.pop %v146
    %v181 = vtanh.pop %v151
    %v182 = vtanh.pop %v156
    %v183 = vtanh.pop %v161
    %v184 = vtanh.pop %v166
    %v185 = vtanh.pop %v171
    %v186 = vtanh.pop %v176
    %v187 = vmul.f32 %v179, %v179
    %v188 = vmul.f32 %v180, %v180
    %v189 = vmul.f32 %v181, %v181
    %v190 = vmul.f32 %v182, %v182
    %v191 = vmul.f32 %v183, %v183
    %v192 = vmul.f32 %v184, %v184
    %v193 = vmul.f32 %v185, %v185
    %v194 = vmul.f32 %v186, %v186
    %v195 = vrot.slane %v187, 4
    %v196 = vadd.f32 %v187, %v195
    %v197 = vrot.slane %v196, 2
    %v198 = vadd.f32 %v196, %v197
    %v199 = vrot.slane %v198, 1
    %v200 = vadd.f32 %v198, %v199
    %v201 = vrot.slane %v188, 4
    %v202 = vadd.f32 %v188, %v201
    %v203 = vrot.slane %v202, 2
    %v204 = vadd.f32 %v202, %v203
    %v205 = vrot.slane %v204, 1
    %v206 = vadd.f32 %v204, %v205
    %v207 = vrot.slane %v189, 4
    %v208 = vadd.f32 %v189, %v207
    %v209 = vrot.slane %v208, 2
    %v210 = vadd.f32 %v208, %v209
    %v211 = vrot.slane %v210, 1
    %v212 = vadd.f32 %v210, %v211
    %v213 = vrot.slane %v190, 4
    %v214 = vadd.f32 %v190, %v213
    %v215 = vrot.slane %v214, 2
    %v216 = vadd.f32 %v214, %v215
    %v217 = vrot.slane %v216, 1
    %v218 = vadd.f32 %v216, %v217
    %v219 = vrot.slane %v191, 4
    %v220 = vadd.f32 %v191, %v219
    %v221 = vrot.slane %v220, 2
    %v222 = vadd.f32 %v220, %v221
    %v223 = vrot.slane %v222, 1
    %v224 = vadd.f32 %v222, %v223
    %v225 = vrot.slane %v192, 4
    %v226 = vadd.f32 %v192, %v225
    %v227 = vrot.slane %v226, 2
    %v228 = vadd.f32 %v226, %v227
    %v229 = vrot.slane %v228, 1
    %v230 = vadd.f32 %v228, %v229
    %v231 = vrot.slane %v193, 4
    %v232 = vadd.f32 %v193, %v231
    %v233 = vrot.slane %v232, 2
    %v234 = vadd.f32 %v232, %v233
    %v235 = vrot.slane %v234, 1
    %v236 = vadd.f32 %v234, %v235
    %v237 = vrot.slane %v194, 4
    %v238 = vadd.f32 %v194, %v237
    %v239 = vrot.slane %v238, 2
    %v240 = vadd.f32 %v238, %v239
    %v241 = vrot.slane %v240, 1
    %v242 = vadd.f32 %v240, %v241
    %v243 = vmax.f32 %v200, 1e-24
    %v244 = vmax.f32 %v206, 1e-24
    %v245 = vmax.f32 %v212, 1e-24
    %v246 = vmax.f32 %v218, 1e-24
    %v247 = vmax.f32 %v224, 1e-24
    %v248 = vmax.f32 %v230, 1e-24
    %v249 = vmax.f32 %v236, 1e-24
    %v250 = vmax.f32 %v242, 1e-24
    %v251 = vrsqrt.pop %v243
    %v252 = vrsqrt.pop %v244
    %v253 = vrsqrt.pop %v245
    %v254 = vrsqrt.pop %v246
    %v255 = vrsqrt.pop %v247
    %v256 = vrsqrt.pop %v248
    %v257 = vrsqrt.pop %v249
    %v258 = vrsqrt.pop %v250
    %v259 = vmul.f32 %v179, %v251
    %v260 = vmul.f32 %v180, %v252
    %v261 = vmul.f32 %v181, %v253
    %v262 = vmul.f32 %v182, %v254
    %v263 = vmul.f32 %v183, %v255
    %v264 = vmul.f32 %v184, %v256
    %v265 = vmul.f32 %v185, %v257
    %v266 = vmul.f32 %v186, %v258
    %267 = vst [vmem:[#allocation7] sm:$0xff] %v259
    %268 = vst [vmem:[#allocation7 + $0x8] sm:$0xff] %v260
    %269 = vst [vmem:[#allocation7 + $0x10] sm:$0xff] %v261
    %270 = vst [vmem:[#allocation7 + $0x18] sm:$0xff] %v262
    %271 = vst [vmem:[#allocation7 + $0x20] sm:$0xff] %v263
    %272 = vst [vmem:[#allocation7 + $0x28] sm:$0xff] %v264
    %273 = vst [vmem:[#allocation7 + $0x30] sm:$0xff] %v265
    %274 = vst [vmem:[#allocation7 + $0x38] sm:$0xff] %v266
    // Predicated region
    $region22: #{tpu_custom_call.1} parent=1 // pred_check
      _
    $region23: #{tpu_custom_call.1} parent=1 // pred_check_branch
      %276 = sbr.rel (0) target = $region25
    $region24: #{tpu_custom_call.1} parent=1 // pred_region
      %s278 = ssub.s32 1024, 1024
      %279 = vsyncadd [#allocation4], %s278
      %s280 = sshll.u32 [#allocation7], 4
      %s281 = int_to_ptr.vmem [resolvable:$true] %s280
      %286 = dma.vmem_to_hbm [thread:$0]  %s281, 1024, %s3, [#allocation4], 128, 128, 8
    $region25: #{tpu_custom_call.1} parent=1 // pred_fallthru
      _
    // Predicated region
    $region26: #{tpu_custom_call.1} parent=1 // pred_check
      _
    $region27: #{tpu_custom_call.1} parent=1 // pred_check_branch
      %288 = sbr.rel (0) target = $region29
    $region28: #{tpu_custom_call.1} parent=1 // pred_region
      %289 = dma.done [#allocation4], 1024
    $region29: #{tpu_custom_call.1} parent=1 // pred_fallthru
      _
    %290 = vsyncpa [#allocation3], 1
    %291 = vsyncpa [#allocation6], 1
    %292 = vsyncpa [#allocation4], 1

</llo_original>
